<compile_context>
chip_gen: v7x
topology: tpu7x:2x2x1
jax: 0.10.0
libtpu: 0.0.40
codegen_flags: <defaults>
</compile_context>

<pallas_src>
import jax
import jax.numpy as jnp
from jax.experimental import pallas as pl
from jax.experimental.pallas import tpu as pltpu


def _pooler_head_kernel(mask_ref, h_ref, w_ref, b_ref, out_ref, acc_ref):
    # mask_ref: (tb, ts) f32   -- already scaled by 1/sum(mask) per row
    # h_ref:    (tb, ts, H)    -- native dtype (e.g. bf16), layer k's tile
    # w_ref:    (4, H, n_class) f32  (PyTorch weight, transposed & stacked)
    # b_ref:    (1, n_class) f32
    # out_ref:  (tb, n_class) f32
    # acc_ref:  (4, tb, H) f32 scratch -- per-layer pooled sums
    k = pl.program_id(1)   # which of the last-four hidden states
    s = pl.program_id(2)   # sequence tile (reduction axis)

    @pl.when((k == 0) & (s == 0))
    def _init():
        acc_ref[...] = jnp.zeros_like(acc_ref)

    # Masked partial average-pool for layer k over this sequence tile
    # (upcast to f32 so all VPU math / accumulation is f32, incl. on v5e).
    h = h_ref[...].astype(jnp.float32)                  # (tb, ts, H)
    m = mask_ref[...]                                   # (tb, ts)
    partial = jnp.sum(h * m[:, :, None], axis=1)        # (tb, H)
    acc_ref[k] = acc_ref[k] + partial

    # Finalize: single small GEMM (concat(pooled) @ W + b) on the last step.
    @pl.when((k == pl.num_programs(1) - 1) & (s == pl.num_programs(2) - 1))
    def _finalize():
        acc = jnp.zeros(out_ref.shape, jnp.float32)
        for kk in range(acc_ref.shape[0]):              # static 4-way unroll
            acc = acc + jnp.dot(acc_ref[kk], w_ref[kk],
                                preferred_element_type=jnp.float32)
        out_ref[...] = (acc + b_ref[...]).astype(out_ref.dtype)


def _pick_tile(dim, candidates):
    """Largest candidate that evenly divides `dim`; otherwise the full dim."""
    for c in candidates:
        if c <= dim and dim % c == 0:
            return c
    return dim


def bert_last_four_pooler_head(hidden_last4, input_mask, weight, bias,
                               *, tb=None, ts=None):
    """hidden_last4: tuple of 4 arrays (B,S,H) ordered
         [hidden_states[-1], [-2], [-3], [-4]]  (or a pre-stacked (4,B,S,H)).
       input_mask: (B,S).  weight: (n_class, 4*H) PyTorch layout.  bias: (n_class,)."""
    if isinstance(hidden_last4, (tuple, list)):
        # In production the backbone would emit the stacked tensor directly;
        # the stack here is one cheap pass vs. 4 separately pipelined inputs.
        h_stack = jnp.stack(list(hidden_last4), axis=0)       # (4,B,S,H) native dtype
    else:
        h_stack = hidden_last4
    _, B, S, H = h_stack.shape
    n_class = weight.shape[0]

    # Fold 1/sum(mask) into the mask once (tiny (B,S) op in the wrapper).
    # NOTE: matches reference semantics -- all-zero mask rows produce NaN/Inf.
    mask = input_mask.astype(jnp.float32)
    msum = jnp.sum(mask, axis=1, keepdims=True)
    mask_scaled = mask / msum                                  # (B, S)

    # Linear params: (n_class, 4H) -> (4, H, n_class), small, kept resident.
    w_stacked = weight.T.astype(jnp.float32).reshape(4, H, n_class)
    b2 = bias.astype(jnp.float32).reshape(1, n_class)

    # Tile sizes honoring the (8,128) rule:
    #   tb: second-to-last dim of mask/out blocks -> multiple of 8 or full B.
    #   ts: last dim of mask block -> multiple of 128 or full S.
    tb = tb if tb is not None else _pick_tile(B, (8,))
    ts = ts if ts is not None else _pick_tile(S, (1024, 512, 256, 128))
    grid = (B // tb, 4, S // ts)

    itemsize = jnp.dtype(h_stack.dtype).itemsize
    cost = pl.CostEstimate(
        flops=int(2 * h_stack.size + 2 * B * 4 * H * n_class),
        transcendentals=0,
        bytes_accessed=int(h_stack.size * itemsize          # stream hidden states
                           + 4 * mask_scaled.size * 4       # mask re-read per layer
                           + w_stacked.size * 4 + b2.size * 4
                           + B * n_class * 4),
    )

    out = pl.pallas_call(
        _pooler_head_kernel,
        out_shape=jax.ShapeDtypeStruct((B, n_class), jnp.float32),
        grid_spec=pltpu.PrefetchScalarGridSpec(
            num_scalar_prefetch=0,
            grid=grid,
            in_specs=[
                # scaled mask tile, re-used across the 4 layers
                pl.BlockSpec((tb, ts), lambda b, k, s: (b, s)),
                # one layer's hidden-state tile per grid step (layer dim squeezed)
                pl.BlockSpec((None, tb, ts, H), lambda b, k, s: (k, b, s, 0)),
                # small linear params, resident in VMEM (constant block index)
                pl.BlockSpec((4, H, n_class), lambda b, k, s: (0, 0, 0)),
                pl.BlockSpec((1, n_class), lambda b, k, s: (0, 0)),
            ],
            out_specs=pl.BlockSpec((tb, n_class), lambda b, k, s: (b, 0)),
            scratch_shapes=[pltpu.VMEM((4, tb, H), jnp.float32)],
        ),
        compiler_params=pltpu.CompilerParams(
            dimension_semantics=("parallel", "arbitrary", "arbitrary"),
            vmem_limit_bytes=48 * 1024 * 1024,
        ),
        cost_estimate=cost,
    )(mask_scaled, h_stack, w_stacked, b2)
    return out


def _reference(hidden_last4, input_mask, weight, bias):
    mask = input_mask.astype(jnp.float32)[:, :, None]          # (B,S,1)
    pooled = [jnp.sum(h.astype(jnp.float32) * mask, axis=1) / jnp.sum(mask, axis=1)
              for h in hidden_last4]
    concat = jnp.concatenate(pooled, axis=1)                   # (B, 4H)
    # 5 dropouts (eval-mode identity) averaged == single linear
    return concat @ weight.T.astype(jnp.float32) + bias.astype(jnp.float32)


if __name__ == "__main__":
    root = jax.random.PRNGKey(0)

    def make_case(key, B, S, H, n_class):
        k_h, k_w, k_b = jax.random.split(key, 3)
        # hidden states in native backbone dtype (bf16); kernel upcasts inside
        hidden_last4 = tuple(
            jax.random.normal(k, (B, S, H), dtype=jnp.float32).astype(jnp.bfloat16)
            for k in jax.random.split(k_h, 4))
        lengths = jnp.maximum(S - (jnp.arange(B) % 5), 1).astype(jnp.int32)
        input_mask = (jnp.arange(S)[None, :] < lengths[:, None]).astype(jnp.float32)
        weight = 0.02 * jax.random.normal(k_w, (n_class, 4 * H), dtype=jnp.float32)
        bias = 0.01 * jax.random.normal(k_b, (n_class,), dtype=jnp.float32)
        return hidden_last4, input_mask, weight, bias

    k1, k2 = jax.random.split(root)

    # Small shapes consistent with the module (B=2, S=8, H=32, n_class=36).
    case1 = make_case(k1, B=2, S=8, H=32, n_class=36)
    logits = jax.block_until_ready(bert_last_four_pooler_head(*case1))
    ref1 = _reference(*case1)
    assert logits.shape == ref1.shape
    assert jnp.allclose(logits, ref1, atol=2e-3, rtol=2e-3), "mismatch (small case)"

    # Second case exercising multi-tile sequence accumulation (grid S-axis > 1).
    case2 = make_case(k2, B=8, S=384, H=128, n_class=36)
    logits2 = jax.block_until_ready(bert_last_four_pooler_head(*case2))
    ref2 = _reference(*case2)
    assert jnp.allclose(logits2, ref2, atol=2e-3, rtol=2e-3), "mismatch (tiled case)"

    print("KERNEL_OK")
</pallas_src>

<mosaic_0001>
module attributes {stable_mosaic.version = 11 : i64} {
  func.func @_pooler_head_kernel(%arg0: i32, %arg1: i32, %arg2: i32, %arg3: memref<2x8xf32, #tpu.memory_space<vmem>>, %arg4: memref<1x2x8x32xbf16, #tpu.memory_space<vmem>>, %arg5: memref<4x32x36xf32, #tpu.memory_space<vmem>>, %arg6: memref<1x36xf32, #tpu.memory_space<vmem>>, %arg7: memref<2x36xf32, #tpu.memory_space<vmem>>, %arg8: memref<4x2x32xf32, #tpu.memory_space<vmem>>) attributes {dimension_semantics = [#tpu.dimension_semantics<parallel>, #tpu.dimension_semantics<arbitrary>, #tpu.dimension_semantics<arbitrary>], iteration_bounds = array<i64: 1, 4, 1>, scalar_prefetch = 0 : i64, scratch_operands = 1 : i64, tpu.core_type = #tpu.core_type<tc>, window_params = [{transform_indices = @transform_0, window_bounds = array<i64: 2, 8>}, {transform_indices = @transform_1, window_bounds = array<i64: 1, 2, 8, 32>}, {pipeline_mode = #tpu.pipeline_mode<synchronous>, transform_indices = @transform_2, window_bounds = array<i64: 4, 32, 36>}, {pipeline_mode = #tpu.pipeline_mode<synchronous>, transform_indices = @transform_3, window_bounds = array<i64: 1, 36>}, {transform_indices = @transform_4, window_bounds = array<i64: 2, 36>}]} {
    %c0_i32 = arith.constant 0 : i32
    %0 = arith.cmpi eq, %arg1, %c0_i32 : i32
    %c0_i32_0 = arith.constant 0 : i32
    %1 = arith.cmpi eq, %arg2, %c0_i32_0 : i32
    %2 = arith.andi %0, %1 : i1
    %3 = arith.extui %2 : i1 to i32
    %c0_i32_1 = arith.constant 0 : i32
    %4 = arith.cmpi ne, %3, %c0_i32_1 : i32
    scf.if %4 {
      %cst_13 = arith.constant 0.000000e+00 : f32
      %26 = vector.broadcast %cst_13 : f32 to vector<4x2x32xf32>
      %c0_14 = arith.constant 0 : index
      %c0_15 = arith.constant 0 : index
      %c0_16 = arith.constant 0 : index
      %27 = vector.load %arg8[%c0_14, %c0_15, %c0_16] : memref<4x2x32xf32, #tpu.memory_space<vmem>>, vector<4x2x32xf32>
      tpu.vector_store %arg8[%c0_14, %c0_15, %c0_16], %26 {strides = array<i32>} : memref<4x2x32xf32, #tpu.memory_space<vmem>>, vector<4x2x32xf32>,
    } else {
    }
    %c0 = arith.constant 0 : index
    %c0_2 = arith.constant 0 : index
    %c0_3 = arith.constant 0 : index
    %c0_4 = arith.constant 0 : index
    %5 = vector.load %arg4[%c0, %c0_2, %c0_3, %c0_4] : memref<1x2x8x32xbf16, #tpu.memory_space<vmem>>, vector<1x2x8x32xbf16>
    %6 = vector.shape_cast %5 : vector<1x2x8x32xbf16> to vector<2x8x32xbf16>
    %7 = arith.extf %6 : vector<2x8x32xbf16> to vector<2x8x32xf32>
    %c0_5 = arith.constant 0 : index
    %c0_6 = arith.constant 0 : index
    %8 = vector.load %arg3[%c0_5, %c0_6] : memref<2x8xf32, #tpu.memory_space<vmem>>, vector<2x8xf32>
    %9 = vector.shape_cast %8 : vector<2x8xf32> to vector<2x8x1xf32>
    %10 = vector.broadcast %9 : vector<2x8x1xf32> to vector<2x8x32xf32>
    %11 = arith.mulf %7, %10 : vector<2x8x32xf32>
    %cst = arith.constant dense<0.000000e+00> : vector<2x32xf32>
    %12 = vector.multi_reduction <add>, %11, %cst [1] : vector<2x8x32xf32> to vector<2x32xf32>
    %13 = arith.index_cast %arg1 : i32 to index
    %c0_7 = arith.constant 0 : index
    %c0_8 = arith.constant 0 : index
    %14 = vector.load %arg8[%13, %c0_7, %c0_8] : memref<4x2x32xf32, #tpu.memory_space<vmem>>, vector<1x2x32xf32>
    %15 = vector.shape_cast %14 : vector<1x2x32xf32> to vector<2x32xf32>
    %16 = arith.addf %15, %12 : vector<2x32xf32>
    %17 = arith.index_cast %arg1 : i32 to index
    %c0_9 = arith.constant 0 : index
    %c0_10 = arith.constant 0 : index
    %18 = vector.load %arg8[%17, %c0_9, %c0_10] : memref<4x2x32xf32, #tpu.memory_space<vmem>>, vector<1x2x32xf32>
    %19 = vector.shape_cast %18 : vector<1x2x32xf32> to vector<2x32xf32>
    %20 = vector.shape_cast %16 : vector<2x32xf32> to vector<1x2x32xf32>
    tpu.vector_store %arg8[%17, %c0_9, %c0_10], %20 {strides = array<i32>} : memref<4x2x32xf32, #tpu.memory_space<vmem>>, vector<1x2x32xf32>,
    %c3_i32 = arith.constant 3 : i32
    %21 = arith.cmpi eq, %arg1, %c3_i32 : i32
    %c0_i32_11 = arith.constant 0 : i32
    %22 = arith.cmpi eq, %arg2, %c0_i32_11 : i32
    %23 = arith.andi %21, %22 : i1
    %24 = arith.extui %23 : i1 to i32
    %c0_i32_12 = arith.constant 0 : i32
    %25 = arith.cmpi ne, %24, %c0_i32_12 : i32
    scf.if %25 {
      %cst_13 = arith.constant 0.000000e+00 : f32
      %26 = vector.broadcast %cst_13 : f32 to vector<2x36xf32>
      %c0_14 = arith.constant 0 : index
      %c0_15 = arith.constant 0 : index
      %c0_16 = arith.constant 0 : index
      %27 = vector.load %arg8[%c0_14, %c0_15, %c0_16] : memref<4x2x32xf32, #tpu.memory_space<vmem>>, vector<1x2x32xf32>
      %28 = vector.shape_cast %27 : vector<1x2x32xf32> to vector<2x32xf32>
      %c0_17 = arith.constant 0 : index
      %c0_18 = arith.constant 0 : index
      %c0_19 = arith.constant 0 : index
      %29 = vector.load %arg5[%c0_17, %c0_18, %c0_19] : memref<4x32x36xf32, #tpu.memory_space<vmem>>, vector<1x32x36xf32>
      %30 = vector.shape_cast %29 : vector<1x32x36xf32> to vector<32x36xf32>
      %cst_20 = arith.constant dense<0.000000e+00> : vector<2x36xf32>
      %31 = tpu.matmul %28, %30, %cst_20 {dimension_numbers = #tpu.dot_dimension_numbers<[1], [0], [0], [1], [0, 0, 1, 1], [], []>} : vector<2x32xf32>, vector<32x36xf32>, vector<2x36xf32> -> vector<2x36xf32>
      %32 = arith.addf %26, %31 : vector<2x36xf32>
      %c1 = arith.constant 1 : index
      %c0_21 = arith.constant 0 : index
      %c0_22 = arith.constant 0 : index
      %33 = vector.load %arg8[%c1, %c0_21, %c0_22] : memref<4x2x32xf32, #tpu.memory_space<vmem>>, vector<1x2x32xf32>
      %34 = vector.shape_cast %33 : vector<1x2x32xf32> to vector<2x32xf32>
      %c1_23 = arith.constant 1 : index
      %c0_24 = arith.constant 0 : index
      %c0_25 = arith.constant 0 : index
      %35 = vector.load %arg5[%c1_23, %c0_24, %c0_25] : memref<4x32x36xf32, #tpu.memory_space<vmem>>, vector<1x32x36xf32>
      %36 = vector.shape_cast %35 : vector<1x32x36xf32> to vector<32x36xf32>
      %cst_26 = arith.constant dense<0.000000e+00> : vector<2x36xf32>
      %37 = tpu.matmul %34, %36, %cst_26 {dimension_numbers = #tpu.dot_dimension_numbers<[1], [0], [0], [1], [0, 0, 1, 1], [], []>} : vector<2x32xf32>, vector<32x36xf32>, vector<2x36xf32> -> vector<2x36xf32>
      %38 = arith.addf %32, %37 : vector<2x36xf32>
      %c2 = arith.constant 2 : index
      %c0_27 = arith.constant 0 : index
      %c0_28 = arith.constant 0 : index
      %39 = vector.load %arg8[%c2, %c0_27, %c0_28] : memref<4x2x32xf32, #tpu.memory_space<vmem>>, vector<1x2x32xf32>
      %40 = vector.shape_cast %39 : vector<1x2x32xf32> to vector<2x32xf32>
      %c2_29 = arith.constant 2 : index
      %c0_30 = arith.constant 0 : index
      %c0_31 = arith.constant 0 : index
      %41 = vector.load %arg5[%c2_29, %c0_30, %c0_31] : memref<4x32x36xf32, #tpu.memory_space<vmem>>, vector<1x32x36xf32>
      %42 = vector.shape_cast %41 : vector<1x32x36xf32> to vector<32x36xf32>
      %cst_32 = arith.constant dense<0.000000e+00> : vector<2x36xf32>
      %43 = tpu.matmul %40, %42, %cst_32 {dimension_numbers = #tpu.dot_dimension_numbers<[1], [0], [0], [1], [0, 0, 1, 1], [], []>} : vector<2x32xf32>, vector<32x36xf32>, vector<2x36xf32> -> vector<2x36xf32>
      %44 = arith.addf %38, %43 : vector<2x36xf32>
      %c3 = arith.constant 3 : index
      %c0_33 = arith.constant 0 : index
      %c0_34 = arith.constant 0 : index
      %45 = vector.load %arg8[%c3, %c0_33, %c0_34] : memref<4x2x32xf32, #tpu.memory_space<vmem>>, vector<1x2x32xf32>
      %46 = vector.shape_cast %45 : vector<1x2x32xf32> to vector<2x32xf32>
      %c3_35 = arith.constant 3 : index
      %c0_36 = arith.constant 0 : index
      %c0_37 = arith.constant 0 : index
      %47 = vector.load %arg5[%c3_35, %c0_36, %c0_37] : memref<4x32x36xf32, #tpu.memory_space<vmem>>, vector<1x32x36xf32>
      %48 = vector.shape_cast %47 : vector<1x32x36xf32> to vector<32x36xf32>
      %cst_38 = arith.constant dense<0.000000e+00> : vector<2x36xf32>
      %49 = tpu.matmul %46, %48, %cst_38 {dimension_numbers = #tpu.dot_dimension_numbers<[1], [0], [0], [1], [0, 0, 1, 1], [], []>} : vector<2x32xf32>, vector<32x36xf32>, vector<2x36xf32> -> vector<2x36xf32>
      %50 = arith.addf %44, %49 : vector<2x36xf32>
      %c0_39 = arith.constant 0 : index
      %c0_40 = arith.constant 0 : index
      %51 = vector.load %arg6[%c0_39, %c0_40] : memref<1x36xf32, #tpu.memory_space<vmem>>, vector<1x36xf32>
      %52 = vector.broadcast %51 : vector<1x36xf32> to vector<2x36xf32>
      %53 = arith.addf %50, %52 : vector<2x36xf32>
      %c0_41 = arith.constant 0 : index
      %c0_42 = arith.constant 0 : index
      %54 = vector.load %arg7[%c0_41, %c0_42] : memref<2x36xf32, #tpu.memory_space<vmem>>, vector<2x36xf32>
      tpu.vector_store %arg7[%c0_41, %c0_42], %53 {strides = array<i32>} : memref<2x36xf32, #tpu.memory_space<vmem>>, vector<2x36xf32>,
    } else {
    }
    return
  }
  func.func @transform_0(%arg0: i32, %arg1: i32, %arg2: i32) -> (i32, i32) {
    %c0_i32 = arith.constant 0 : i32
    return %arg0, %arg2 : i32, i32
  }
  func.func @transform_1(%arg0: i32, %arg1: i32, %arg2: i32) -> (i32, i32, i32, i32) {
    %c0_i32 = arith.constant 0 : i32
    %c0_i32_0 = arith.constant 0 : i32
    return %arg1, %arg0, %arg2, %c0_i32 : i32, i32, i32, i32
  }
  func.func @transform_2(%arg0: i32, %arg1: i32, %arg2: i32) -> (i32, i32, i32) {
    %c0_i32 = arith.constant 0 : i32
    %c0_i32_0 = arith.constant 0 : i32
    %c0_i32_1 = arith.constant 0 : i32
    %c0_i32_2 = arith.constant 0 : i32
    return %c0_i32, %c0_i32_0, %c0_i32_1 : i32, i32, i32
  }
  func.func @transform_3(%arg0: i32, %arg1: i32, %arg2: i32) -> (i32, i32) {
    %c0_i32 = arith.constant 0 : i32
    %c0_i32_0 = arith.constant 0 : i32
    %c0_i32_1 = arith.constant 0 : i32
    return %c0_i32, %c0_i32_0 : i32, i32
  }
  func.func @transform_4(%arg0: i32, %arg1: i32, %arg2: i32) -> (i32, i32) {
    %c0_i32 = arith.constant 0 : i32
    %c0_i32_0 = arith.constant 0 : i32
    return %arg0, %c0_i32 : i32, i32
  }
}

</mosaic_0001>

<llo_original>
// kernel: tpu_custom_call.1
$region0: #{tpu_custom_call.1}
  #allocation0 [shape = 'u32[]', space=smem, size = 0x4, offset = 0x4, fixed_abs, tag = 'smem constant byte address 0x4 - core index']
  #allocation1 [shape = 'u32[144,128]{1,0:T(1,128)}', space=vmem, size = 0x12000, scoped, tag = 'internal scratch']
  #allocation2 [shape = 'f32[4,2,32]{2,1,0:T(2,128)}', space=vmem, size = 0x1000, scoped, tag = 'scratch operand']
  %s0 = inlined_call_operand.hbm [shape: f32[2,8], index: 0, kind: input, shape index: {}]
  %s1 = inlined_call_operand.hbm [shape: bf16[4,2,8,32], index: 1, kind: input, shape index: {}]
  %s2 = inlined_call_operand.hbm [shape: f32[4,32,36], index: 2, kind: input, shape index: {}]
  %s3 = inlined_call_operand.vmem [shape: f32[1,36], index: 3, kind: input, shape index: {}]
  %s4 = inlined_call_operand.hbm [shape: f32[2,36], index: 4, kind: output, shape index: {}]
  %s5 = sld [smem:[#allocation0]]
  $region69: #{tpu_custom_call.1} parent=0
    _
  %s7 = ssub.s32 1, %s5
  %s8 = scalar_select 0, %s7, %s5
  $region1: #{tpu_custom_call.1} parent=0
    #allocation3 [shape = 'u8[1024]{0}', space=vmem, size = 0x400, scoped, tag = 'input window, operand 0, single buffered']
    #allocation4 [shape = 's32[2]{0}', space=sflag, size = 0x8, scoped, tag = 'scoped memory for tpu_custom_call.1']
    #allocation5 [shape = 's32[2]{0}', space=sflag, size = 0x8, scoped, tag = 'scoped memory for tpu_custom_call.1']
    #allocation6 [shape = 'u8[8192]{0}', space=vmem, size = 0x2000, scoped, tag = 'input window, operand 1']
    #allocation7 [shape = 's32[2]{0}', space=sflag, size = 0x8, scoped, tag = 'scoped memory for tpu_custom_call.1']
    #allocation8 [shape = 'u8[65536]{0}', space=vmem, size = 0x10000, scoped, tag = 'input window, operand 2, single buffered']
    #allocation9 [shape = 'u8[1024]{0}', space=vmem, size = 0x400, scoped, tag = 'output window, operand 0, single buffered']
    %9 = vsyncpa [#allocation4], 0
    %10 = vsyncpa [#allocation7], 0
    %s11 = scalar_lea.sflag [#allocation7], 1
    %12 = vsyncpa %s11, 0
    %13 = vsyncpa [#allocation5], 0
    loop: start=0, step=1, limit=6
    $region2: #{tpu_custom_call.1} parent=1 // loop_pre_header
      _
    $region3: #{tpu_custom_call.1} parent=1 // loop_header
      %s15 = sphi 0, %s19
      %p16 = scmp.ge.s32.totalorder %s15, 6
      %s22 = sphi 0, %s41
      %s23 = sphi 0, %s37
      %s24 = sphi 0, %s33
      %s25 = sphi 0, %s22
      %s26 = sphi 0, %s23
      %s27 = sphi 0, %s24
      %s28 = sphi 0, %s25
      %s29 = sphi 0, %s26
      %s30 = sphi 0, %s27
      %s46 = sphi 0, %s48
      %s49 = sphi 0, %s46
      %s50 = sphi 0, %s49
      %s66 = sphi 0, %s50
      %s76 = sphi 0, %s78
      %s79 = sphi 0, %s76
      %s80 = sphi 0, %s79
      %s96 = sphi 0, %s80
      %s100 = sphi 0, %s100
      %s102 = sphi 0, %s100
      %s103 = sphi 0, %s102
      %s117 = sphi 0, %s103
      %s121 = sphi 0, %s121
      %s123 = sphi 0, %s121
      %s124 = sphi 0, %s123
      %s138 = sphi 0, %s124
      %s144 = sphi 0, %s146
      %s147 = sphi 0, %s144
      %s148 = sphi 0, %s147
      %s164 = sphi 0, %s148
    $region4: #{tpu_custom_call.1} parent=1 // loop_header_branch
      %18 = sbr.rel (%p16) target = $region8
    $region5: #{tpu_custom_call.1} parent=1 // loop_body
      %s20 = ssub.s32 %s15, 1
      %s21 = ssub.s32 %s15, 2
      %s31 = sadd.s32 1, %s24
      %p32 = scmp.ge.s32.totalorder %s31, 1
      %s33 = scalar_select %p32, 0, %s31
      %s34 = sadd.s32 1, %s23
      %s35 = scalar_select %p32, %s34, %s23
      %p36 = scmp.ge.s32.totalorder %s35, 4
      %s37 = scalar_select %p36, 0, %s35
      %s38 = sadd.s32 1, %s22
      %s39 = scalar_select %p36, %s38, %s22
      %p40 = scmp.ge.s32.totalorder %s39, 1
      %s41 = scalar_select %p40, 0, %s39
      %s42 = ssub.s32 %s22, %s41
      %s43 = ssub.s32 %s24, %s33
      %s44 = sor.u32 %s42, %s43
      %p45 = scmp.eq.s32.totalorder %s44, 0
      %s47 = sadd.s32 %s46, 1
      %s48 = scalar_select %p45, %s46, %s47
      %p51 = pneg %p45
      %p52 = scmp.eq.s32.totalorder %s15, 3
      %p53 = por %p51, %p52
      %p54 = scmp.ne.s32.totalorder %s46, %s49
      %p55 = scmp.eq.s32.totalorder %s15, 0
      %p56 = por %p54, %p55
      %p57 = scmp.ne.s32.totalorder %s46, %s49
      %p58 = scmp.eq.s32.totalorder %s20, 3
      %p59 = por %p57, %p58
      %p60 = scmp.ne.s32.totalorder %s49, %s50
      %p61 = scmp.eq.s32.totalorder %s20, 0
      %p62 = por %p60, %p61
      %p63 = scmp.ne.s32.totalorder %s49, %s50
      %p64 = scmp.eq.s32.totalorder %s21, 3
      %p65 = por %p63, %p64
      %p67 = scmp.ne.s32.totalorder %s50, %s66
      %p68 = scmp.eq.s32.totalorder %s21, 0
      %p69 = por %p67, %p68
      %s70 = ssub.s32 %s23, %s37
      %s71 = ssub.s32 %s22, %s41
      %s72 = sor.u32 %s70, %s71
      %s73 = ssub.s32 %s24, %s33
      %s74 = sor.u32 %s72, %s73
      %p75 = scmp.eq.s32.totalorder %s74, 0
      %s77 = sadd.s32 %s76, 1
      %s78 = scalar_select %p75, %s76, %s77
      %p81 = pneg %p75
      %p82 = scmp.eq.s32.totalorder %s15, 3
      %p83 = por %p81, %p82
      %p84 = scmp.ne.s32.totalorder %s76, %s79
      %p85 = scmp.eq.s32.totalorder %s15, 0
      %p86 = por %p84, %p85
      %p87 = scmp.ne.s32.totalorder %s76, %s79
      %p88 = scmp.eq.s32.totalorder %s20, 3
      %p89 = por %p87, %p88
      %p90 = scmp.ne.s32.totalorder %s79, %s80
      %p91 = scmp.eq.s32.totalorder %s20, 0
      %p92 = por %p90, %p91
      %p93 = scmp.ne.s32.totalorder %s79, %s80
      %p94 = scmp.eq.s32.totalorder %s21, 3
      %p95 = por %p93, %p94
      %p97 = scmp.ne.s32.totalorder %s80, %s96
      %p98 = scmp.eq.s32.totalorder %s21, 0
      %p99 = por %p97, %p98
      %s101 = sadd.s32 %s100, 1
      %p104 = scmp.eq.s32.totalorder %s15, 3
      %p105 = scmp.ne.s32.totalorder %s100, %s102
      %p106 = scmp.eq.s32.totalorder %s15, 0
      %p107 = por %p105, %p106
      %p108 = scmp.ne.s32.totalorder %s100, %s102
      %p109 = scmp.eq.s32.totalorder %s20, 3
      %p110 = por %p108, %p109
      %p111 = scmp.ne.s32.totalorder %s102, %s103
      %p112 = scmp.eq.s32.totalorder %s20, 0
      %p113 = por %p111, %p112
      %p114 = scmp.ne.s32.totalorder %s102, %s103
      %p115 = scmp.eq.s32.totalorder %s21, 3
      %p116 = por %p114, %p115
      %p118 = scmp.ne.s32.totalorder %s103, %s117
      %p119 = scmp.eq.s32.totalorder %s21, 0
      %p120 = por %p118, %p119
      %s122 = sadd.s32 %s121, 1
      %p125 = scmp.eq.s32.totalorder %s15, 3
      %p126 = scmp.ne.s32.totalorder %s121, %s123
      %p127 = scmp.eq.s32.totalorder %s15, 0
      %p128 = por %p126, %p127
      %p129 = scmp.ne.s32.totalorder %s121, %s123
      %p130 = scmp.eq.s32.totalorder %s20, 3
      %p131 = por %p129, %p130
      %p132 = scmp.ne.s32.totalorder %s123, %s124
      %p133 = scmp.eq.s32.totalorder %s20, 0
      %p134 = por %p132, %p133
      %p135 = scmp.ne.s32.totalorder %s123, %s124
      %p136 = scmp.eq.s32.totalorder %s21, 3
      %p137 = por %p135, %p136
      %p139 = scmp.ne.s32.totalorder %s124, %s138
      %p140 = scmp.eq.s32.totalorder %s21, 0
      %p141 = por %p139, %p140
      %s142 = ssub.s32 %s22, %s41
      %p143 = scmp.eq.s32.totalorder %s142, 0
      %s145 = sadd.s32 %s144, 1
      %s146 = scalar_select %p143, %s144, %s145
      %p149 = pneg %p143
      %p150 = scmp.eq.s32.totalorder %s15, 3
      %p151 = por %p149, %p150
      %p152 = scmp.ne.s32.totalorder %s144, %s147
      %p153 = scmp.eq.s32.totalorder %s15, 0
      %p154 = por %p152, %p153
      %p155 = scmp.ne.s32.totalorder %s144, %s147
      %p156 = scmp.eq.s32.totalorder %s20, 3
      %p157 = por %p155, %p156
      %p158 = scmp.ne.s32.totalorder %s147, %s148
      %p159 = scmp.eq.s32.totalorder %s20, 0
      %p160 = por %p158, %p159
      %p161 = scmp.ne.s32.totalorder %s147, %s148
      %p162 = scmp.eq.s32.totalorder %s21, 3
      %p163 = por %p161, %p162
      %p165 = scmp.ne.s32.totalorder %s148, %s164
      %p166 = scmp.eq.s32.totalorder %s21, 0
      %p167 = por %p165, %p166
      %p168 = scmp.le.s32.totalorder 1, %s15
      %p169 = scmp.lt.s32.totalorder %s15, 5
      %p170 = pnand %p168, %p169
      %p171 = pneg %p170
      // Predicated region
      $region9: #{tpu_custom_call.1} parent=5 // pred_check
        _
      $region10: #{tpu_custom_call.1} parent=5 // pred_check_branch
        %173 = sbr.rel (%p170) target = $region12
      $region11: #{tpu_custom_call.1} parent=5 // pred_region
        %s174 = ssub.s32 %s15, 1
        // Predicated region
        $region13: #{tpu_custom_call.1} parent=11 // pred_check
          %p175 = pneg %p62
        $region14: #{tpu_custom_call.1} parent=11 // pred_check_branch
          %177 = sbr.rel (%p175) target = $region16
        $region15: #{tpu_custom_call.1} parent=11 // pred_region
          %s179 = ssub.s32 32, 32
          %180 = vsyncadd [#allocation4], %s179
          %s181 = sadd.s32 %s27, %s25
          %s182 = smul.addr %s181, 32
          %s183 = scalar_lea.hbm %s0, %s182
          %s185 = sshll.u32 [#allocation3], 4
          %s186 = int_to_ptr.vmem [resolvable:$true] %s185
          %188 = dma.hbm_to_vmem [thread:$0]  %s183, 32, %s186, [#allocation4]
        $region16: #{tpu_custom_call.1} parent=11 // pred_fallthru
          _
        // Predicated region
        $region17: #{tpu_custom_call.1} parent=11 // pred_check
          %p189 = pneg %p113
        $region18: #{tpu_custom_call.1} parent=11 // pred_check_branch
          %191 = sbr.rel (%p189) target = $region20
        $region19: #{tpu_custom_call.1} parent=11 // pred_region
          %s193 = ssub.s32 2048, 2048
          %194 = vsyncadd [#allocation7], %s193
          %s195 = sshll.u32 [#allocation8], 4
          %s196 = int_to_ptr.vmem [resolvable:$true] %s195
          %201 = dma.hbm_to_vmem [thread:$0]  %s2, 2048, %s196, [#allocation7], 128, 128, 8
        $region20: #{tpu_custom_call.1} parent=11 // pred_fallthru
          _
        // Predicated region
        $region21: #{tpu_custom_call.1} parent=11 // pred_check
          %p202 = pneg %p134
        $region22: #{tpu_custom_call.1} parent=11 // pred_check_branch
          %204 = sbr.rel (%p202) target = $region24
        $region23: #{tpu_custom_call.1} parent=11 // pred_region
          _
        $region24: #{tpu_custom_call.1} parent=11 // pred_fallthru
          _
      $region12: #{tpu_custom_call.1} parent=5 // pred_fallthru
        _
      %p205 = scmp.lt.s32.totalorder %s15, 4
      // Predicated region
      $region25: #{tpu_custom_call.1} parent=5 // pred_check
        %p206 = pneg %p205
      $region26: #{tpu_custom_call.1} parent=5 // pred_check_branch
        %208 = sbr.rel (%p206) target = $region28
      $region27: #{tpu_custom_call.1} parent=5 // pred_region
        // Predicated region
        $region29: #{tpu_custom_call.1} parent=27 // pred_check
          %p209 = pneg %p86
        $region30: #{tpu_custom_call.1} parent=27 // pred_check_branch
          %211 = sbr.rel (%p209) target = $region32
        $region31: #{tpu_custom_call.1} parent=27 // pred_region
          %s212 = sand.u32 %s15, 1
          %s213 = scalar_lea.sflag [#allocation7], %s212
          %s214 = sand.u32 %s76, 1
          %s215 = smul.addr %s214, 8
          %s216 = scalar_lea.vmem [#allocation6], %s215
          %s217 = smul.u32 2, %s22
          %s219 = ssub.s32 128, 128
          %220 = vsyncadd %s213, %s219
          %s221 = sadd.s32 %s24, %s217
          %s222 = smul.addr %s23, 2
          %s223 = sadd.s32 %s221, %s222
          %s224 = smul.addr %s223, 64
          %s225 = scalar_lea.hbm %s1, %s224
          %s226 = sshll.u32 %s216, 4
          %s227 = int_to_ptr.vmem [resolvable:$true] %s226
          %232 = dma.hbm_to_vmem [thread:$0]  %s225, 128, %s227, %s213, 64, 64, 4
        $region32: #{tpu_custom_call.1} parent=27 // pred_fallthru
          _
      $region28: #{tpu_custom_call.1} parent=5 // pred_fallthru
        _
      %p233 = scmp.le.s32.totalorder 1, %s15
      %p234 = scmp.lt.s32.totalorder %s15, 5
      %p235 = pnand %p233, %p234
      %p236 = pneg %p235
      // Predicated region
      $region33: #{tpu_custom_call.1} parent=5 // pred_check
        _
      $region34: #{tpu_custom_call.1} parent=5 // pred_check_branch
        %238 = sbr.rel (%p235) target = $region36
      $region35: #{tpu_custom_call.1} parent=5 // pred_region
        %s239 = ssub.s32 %s15, 1
        // Predicated region
        $region37: #{tpu_custom_call.1} parent=35 // pred_check
          %p240 = pneg %p62
        $region38: #{tpu_custom_call.1} parent=35 // pred_check_branch
          %242 = sbr.rel (%p240) target = $region40
        $region39: #{tpu_custom_call.1} parent=35 // pred_region
          %243 = dma.done [#allocation4], 32
        $region40: #{tpu_custom_call.1} parent=35 // pred_fallthru
          _
        %s244 = sand.u32 %s20, 1
        %s245 = scalar_lea.sflag [#allocation7], %s244
        %s246 = sand.u32 %s79, 1
        %s247 = smul.addr %s246, 8
        %s248 = scalar_lea.vmem [#allocation6], %s247
        // Predicated region
        $region41: #{tpu_custom_call.1} parent=35 // pred_check
          %p249 = pneg %p92
        $region42: #{tpu_custom_call.1} parent=35 // pred_check_branch
          %251 = sbr.rel (%p249) target = $region44
        $region43: #{tpu_custom_call.1} parent=35 // pred_region
          %252 = dma.done %s245, 128
        $region44: #{tpu_custom_call.1} parent=35 // pred_fallthru
          _
        // Predicated region
        $region45: #{tpu_custom_call.1} parent=35 // pred_check
          %p253 = pneg %p113
        $region46: #{tpu_custom_call.1} parent=35 // pred_check_branch
          %255 = sbr.rel (%p253) target = $region48
        $region47: #{tpu_custom_call.1} parent=35 // pred_region
          %256 = dma.done [#allocation7], 2048
        $region48: #{tpu_custom_call.1} parent=35 // pred_fallthru
          _
        %p257 = pneg %p62
        %p258 = pneg %p59
        %s259 = sand.u32 %s20, 1
        %s260 = scalar_lea.sflag [#allocation7], %s259
        %s261 = sand.u32 %s79, 1
        %s262 = smul.addr %s261, 8
        %s263 = scalar_lea.vmem [#allocation6], %s262
        %p264 = pneg %p92
        %p265 = pneg %p89
        %p266 = pneg %p113
        %p267 = pneg %p110
        %p268 = pneg %p134
        %p269 = pneg %p131
        %p270 = pneg %p160
        %p271 = pneg %p157
        %s272 = smul.u32 2, %s25
        %p273 = scmp.eq.s32.totalorder %s26, 0
        %p274 = scmp.eq.s32.totalorder %s27, 0
        %p275 = pnand %p273, %p274
        %p276 = pneg %p275
        // Predicated region
        $region49: #{tpu_custom_call.1} parent=35 // pred_check
          _
        $region50: #{tpu_custom_call.1} parent=35 // pred_check_branch
          %278 = sbr.rel (%p275) target = $region52
        $region51: #{tpu_custom_call.1} parent=35 // pred_region
          %vm279 = vcmask 254976
          %280 = vst.msk [vmem:[#allocation2] sm:$0x3] %vm279, 0.0
          %281 = vst.msk [vmem:[#allocation2 + $0x2] sm:$0x3] %vm279, 0.0
          %282 = vst.msk [vmem:[#allocation2 + $0x4] sm:$0x3] %vm279, 0.0
          %283 = vst.msk [vmem:[#allocation2 + $0x6] sm:$0x3] %vm279, 0.0
        $region52: #{tpu_custom_call.1} parent=35 // pred_fallthru
          _
        %v284 = vld [vmem:[%s248] sm:$0xf]
        %v285 = vld [vmem:[%s248 + $0x4] sm:$0xf]
        %v286 = vunpack.c.l.bf16 %v284
        %v287 = vunpack.c.l.bf16 %v285
        %v288 = vld [vmem:[#allocation3] sm:$0x3]
        %v289 = vlaneseq
        %v290 = vshrl.u32 %v289, 7
        %v291 = vsub.s32 0, %v290
        %v292 = vrot.slane %v288, %v291
        %294 = vbcast.lane.b32.xlu0 %v292, 256
        %v295 = vpop.permute.xlu0 %294
        %v296 = vlaneseq
        %v297 = vshrl.u32 %v296, 7
        %v298 = vsub.s32 1, %v297
        %v299 = vrot.slane %v288, %v298
        %301 = vbcast.lane.b32.xlu0 %v299, 256
        %v302 = vpop.permute.xlu0 %301
        %v303 = vmul.f32 %v286, %v295
        %v304 = vmul.f32 %v287, %v302
        %vm305 = vcmask 261120
        %v306 = vsel %vm305, %v303, 0.0
        %v307 = vrot.slane %v306, 4
        %v308 = vadd.f32 %v306, %v307
        %v309 = vrot.slane %v308, 2
        %v310 = vadd.f32 %v308, %v309
        %v311 = vrot.slane %v310, 1
        %v312 = vadd.f32 %v310, %v311
        %v313 = vsel %vm305, %v304, 0.0
        %v314 = vrot.slane %v313, 4
        %v315 = vadd.f32 %v313, %v314
        %v316 = vrot.slane %v315, 2
        %v317 = vadd.f32 %v315, %v316
        %v318 = vrot.slane %v317, 1
        %v319 = vadd.f32 %v317, %v318
        %s320 = smul.u32 %s26, 2
        %s321 = scalar_lea.vmem [#allocation2], %s320
        %v322 = vld [vmem:[%s321] sm:$0x3]
        %vm325 = vcmask 1041409
        %v326 = vsel %vm325, %v319, %v312
        %v328 = vadd.f32 %v322, %v326
        %vm329 = vcmask 254976
        %330 = vst.msk [vmem:[%s321] sm:$0x3] %vm329, %v328
        %p331 = scmp.eq.s32.totalorder %s26, 3
        %p332 = pnand %p331, %p274
        %p333 = pneg %p332
        // Predicated region
        $region53: #{tpu_custom_call.1} parent=35 // pred_check
          _
        $region54: #{tpu_custom_call.1} parent=35 // pred_check_branch
          %335 = sbr.rel (%p332) target = $region56
        $region55: #{tpu_custom_call.1} parent=35 // pred_region
          %v336 = vld [vmem:[#allocation2] sm:$0x3]
          %v337 = vld [vmem:[#allocation8] sm:$0xff]
          %v338 = vld [vmem:[#allocation8 + $0x8] sm:$0xff]
          %v339 = vld [vmem:[#allocation8 + $0x10] sm:$0xff]
          %v340 = vld [vmem:[#allocation8 + $0x18] sm:$0xff]
          %s341 = scalar_lea.vmem [#allocation2], 2
          %v342 = vld [vmem:[%s341] sm:$0x3]
          %s343 = scalar_lea.vmem [#allocation8], 32
          %v344 = vld [vmem:[%s343] sm:$0xff]
          %v345 = vld [vmem:[%s343 + $0x8] sm:$0xff]
          %v346 = vld [vmem:[%s343 + $0x10] sm:$0xff]
          %v347 = vld [vmem:[%s343 + $0x18] sm:$0xff]
          %v349 = vsel %vm305, %v342, 0
          %351 = vmatprep.subr.mxu0 0.0
          %352 = vmatpush1.msra.mxu0 %v344
          %353 = vmatprep.subr.mxu0 0.0
          %354 = vmatpush1.msra.mxu0 %v345
          %355 = vmatprep.subr.mxu0 0.0
          %356 = vmatpush1.msra.mxu0 %v346
          %357 = vmatprep.subr.mxu0 0.0
          %358 = vmatpush1.msra.mxu0 %v347
          %359 = vmatprep.subr.mxu0 0.0
          %360 = vmatpush1.msra.mxu0 0.0
          %361 = vmatprep.subr.mxu0 0.0
          %362 = vmatpush1.msra.mxu0 0.0
          %363 = vmatprep.subr.mxu0 0.0
          %364 = vmatpush1.msra.mxu0 0.0
          %365 = vmatprep.subr.mxu0 0.0
          %366 = vmatpush1.msra.mxu0 0.0
          %367 = vmatprep.subr.mxu0 0.0
          %368 = vmatpush1.msra.mxu0 0.0
          %369 = vmatprep.subr.mxu0 0.0
          %370 = vmatpush1.msra.mxu0 0.0
          %371 = vmatprep.subr.mxu0 0.0
          %372 = vmatpush1.msra.mxu0 0.0
          %373 = vmatprep.subr.mxu0 0.0
          %374 = vmatpush1.msra.mxu0 0.0
          %375 = vmatprep.subr.mxu0 0.0
          %376 = vmatpush1.msra.mxu0 0.0
          %377 = vmatprep.subr.mxu0 0.0
          %378 = vmatpush1.msra.mxu0 0.0
          %379 = vmatprep.subr.mxu0 0.0
          %380 = vmatpush1.msra.mxu0 0.0
          %381 = vmatprep.subr.mxu0 0.0
          %382 = vmatpush1.msra.mxu0 0.0
          %383 = vmatprep.subr.mxu0 0.0
          %384 = vmatpush1.msra.mxu0 0.0
          %385 = vmatprep.subr.mxu0 0.0
          %386 = vmatpush1.msra.mxu0 0.0
          %387 = vmatprep.subr.mxu0 0.0
          %388 = vmatpush1.msra.mxu0 0.0
          %389 = vmatprep.subr.mxu0 0.0
          %390 = vmatpush1.msra.mxu0 0.0
          %391 = vmatprep.subr.mxu0 0.0
          %392 = vmatpush1.msra.mxu0 0.0
          %393 = vmatprep.subr.mxu0 0.0
          %394 = vmatpush1.msra.mxu0 0.0
          %395 = vmatprep.subr.mxu0 0.0
          %396 = vmatpush1.msra.mxu0 0.0
          %397 = vmatprep.subr.mxu0 0.0
          %398 = vmatpush1.msra.mxu0 0.0
          %399 = vmatprep.subr.mxu0 0.0
          %400 = vmatpush1.msra.mxu0 0.0
          %401 = vmatprep.subr.mxu0 0.0
          %402 = vmatpush1.msra.mxu0 0.0
          %403 = vmatprep.subr.mxu0 0.0
          %404 = vmatpush1.msra.mxu0 0.0
          %405 = vmatprep.subr.mxu0 0.0
          %406 = vmatpush1.msra.mxu0 0.0
          %407 = vmatprep.subr.mxu0 0.0
          %408 = vmatpush1.msra.mxu0 0.0
          %409 = vmatprep.subr.mxu0 0.0
          %410 = vmatpush1.msra.mxu0 0.0
          %411 = vmatprep.subr.mxu0 0.0
          %412 = vmatpush1.msra.mxu0 0.0
          %413 = vmatprep.subr.mxu0 0.0
          %414 = vmatpush1.msra.mxu0 0.0
          %415 = vmatprep.mubr.f32.mxu0 0.0
          %416 = vmatmul.mubr.f32.gmra.mrb[0].mxu0 %v349
          %v417 = vpop.f32.mrb[0].mxu0
          %v418 = vadd.f32 0.0, %v417
          %v419 = vpop.f32.mrb[0].mxu0
          %420 = vdwg.mxu0
          %v422 = vsel %vm305, %v336, 0
          %424 = vmatprep.subr.mxu0 0.0
          %425 = vmatpush1.msra.mxu0 %v337
          %426 = vmatprep.subr.mxu0 0.0
          %427 = vmatpush1.msra.mxu0 %v338
          %428 = vmatprep.subr.mxu0 0.0
          %429 = vmatpush1.msra.mxu0 %v339
          %430 = vmatprep.subr.mxu0 0.0
          %431 = vmatpush1.msra.mxu0 %v340
          %432 = vmatprep.subr.mxu0 0.0
          %433 = vmatpush1.msra.mxu0 0.0
          %434 = vmatprep.subr.mxu0 0.0
          %435 = vmatpush1.msra.mxu0 0.0
          %436 = vmatprep.subr.mxu0 0.0
          %437 = vmatpush1.msra.mxu0 0.0
          %438 = vmatprep.subr.mxu0 0.0
          %439 = vmatpush1.msra.mxu0 0.0
          %440 = vmatprep.subr.mxu0 0.0
          %441 = vmatpush1.msra.mxu0 0.0
          %442 = vmatprep.subr.mxu0 0.0
          %443 = vmatpush1.msra.mxu0 0.0
          %444 = vmatprep.subr.mxu0 0.0
          %445 = vmatpush1.msra.mxu0 0.0
          %446 = vmatprep.subr.mxu0 0.0
          %447 = vmatpush1.msra.mxu0 0.0
          %448 = vmatprep.subr.mxu0 0.0
          %449 = vmatpush1.msra.mxu0 0.0
          %450 = vmatprep.subr.mxu0 0.0
          %451 = vmatpush1.msra.mxu0 0.0
          %452 = vmatprep.subr.mxu0 0.0
          %453 = vmatpush1.msra.mxu0 0.0
          %454 = vmatprep.subr.mxu0 0.0
          %455 = vmatpush1.msra.mxu0 0.0
          %456 = vmatprep.subr.mxu0 0.0
          %457 = vmatpush1.msra.mxu0 0.0
          %458 = vmatprep.subr.mxu0 0.0
          %459 = vmatpush1.msra.mxu0 0.0
          %460 = vmatprep.subr.mxu0 0.0
          %461 = vmatpush1.msra.mxu0 0.0
          %462 = vmatprep.subr.mxu0 0.0
          %463 = vmatpush1.msra.mxu0 0.0
          %464 = vmatprep.subr.mxu0 0.0
          %465 = vmatpush1.msra.mxu0 0.0
          %466 = vmatprep.subr.mxu0 0.0
          %467 = vmatpush1.msra.mxu0 0.0
          %468 = vmatprep.subr.mxu0 0.0
          %469 = vmatpush1.msra.mxu0 0.0
          %470 = vmatprep.subr.mxu0 0.0
          %471 = vmatpush1.msra.mxu0 0.0
          %472 = vmatprep.subr.mxu0 0.0
          %473 = vmatpush1.msra.mxu0 0.0
          %474 = vmatprep.subr.mxu0 0.0
          %475 = vmatpush1.msra.mxu0 0.0
          %476 = vmatprep.subr.mxu0 0.0
          %477 = vmatpush1.msra.mxu0 0.0
          %478 = vmatprep.subr.mxu0 0.0
          %479 = vmatpush1.msra.mxu0 0.0
          %480 = vmatprep.subr.mxu0 0.0
          %481 = vmatpush1.msra.mxu0 0.0
          %482 = vmatprep.subr.mxu0 0.0
          %483 = vmatpush1.msra.mxu0 0.0
          %484 = vmatprep.subr.mxu0 0.0
          %485 = vmatpush1.msra.mxu0 0.0
          %486 = vmatprep.subr.mxu0 0.0
          %487 = vmatpush1.msra.mxu0 0.0
          %488 = vmatprep.mubr.f32.mxu0 0.0
          %489 = vmatmul.mubr.f32.gmra.mrb[0].mxu0 %v422
          %v490 = vpop.f32.mrb[0].mxu0
          %v491 = vadd.f32 %v418, %v490
          %v492 = vpop.f32.mrb[0].mxu0
          %493 = vdwg.mxu0
          %s494 = scalar_lea.vmem [#allocation2], 4
          %v495 = vld [vmem:[%s494] sm:$0x3]
          %s496 = scalar_lea.vmem [#allocation8], 64
          %v497 = vld [vmem:[%s496] sm:$0xff]
          %v498 = vld [vmem:[%s496 + $0x8] sm:$0xff]
          %v499 = vld [vmem:[%s496 + $0x10] sm:$0xff]
          %v500 = vld [vmem:[%s496 + $0x18] sm:$0xff]
          %v502 = vsel %vm305, %v495, 0
          %504 = vmatprep.subr.mxu0 0.0
          %505 = vmatpush1.msra.mxu0 %v497
          %506 = vmatprep.subr.mxu0 0.0
          %507 = vmatpush1.msra.mxu0 %v498
          %508 = vmatprep.subr.mxu0 0.0
          %509 = vmatpush1.msra.mxu0 %v499
          %510 = vmatprep.subr.mxu0 0.0
          %511 = vmatpush1.msra.mxu0 %v500
          %512 = vmatprep.subr.mxu0 0.0
          %513 = vmatpush1.msra.mxu0 0.0
          %514 = vmatprep.subr.mxu0 0.0
          %515 = vmatpush1.msra.mxu0 0.0
          %516 = vmatprep.subr.mxu0 0.0
          %517 = vmatpush1.msra.mxu0 0.0
          %518 = vmatprep.subr.mxu0 0.0
          %519 = vmatpush1.msra.mxu0 0.0
          %520 = vmatprep.subr.mxu0 0.0
          %521 = vmatpush1.msra.mxu0 0.0
          %522 = vmatprep.subr.mxu0 0.0
          %523 = vmatpush1.msra.mxu0 0.0
          %524 = vmatprep.subr.mxu0 0.0
          %525 = vmatpush1.msra.mxu0 0.0
          %526 = vmatprep.subr.mxu0 0.0
          %527 = vmatpush1.msra.mxu0 0.0
          %528 = vmatprep.subr.mxu0 0.0
          %529 = vmatpush1.msra.mxu0 0.0
          %530 = vmatprep.subr.mxu0 0.0
          %531 = vmatpush1.msra.mxu0 0.0
          %532 = vmatprep.subr.mxu0 0.0
          %533 = vmatpush1.msra.mxu0 0.0
          %534 = vmatprep.subr.mxu0 0.0
          %535 = vmatpush1.msra.mxu0 0.0
          %536 = vmatprep.subr.mxu0 0.0
          %537 = vmatpush1.msra.mxu0 0.0
          %538 = vmatprep.subr.mxu0 0.0
          %539 = vmatpush1.msra.mxu0 0.0
          %540 = vmatprep.subr.mxu0 0.0
          %541 = vmatpush1.msra.mxu0 0.0
          %542 = vmatprep.subr.mxu0 0.0
          %543 = vmatpush1.msra.mxu0 0.0
          %544 = vmatprep.subr.mxu0 0.0
          %545 = vmatpush1.msra.mxu0 0.0
          %546 = vmatprep.subr.mxu0 0.0
          %547 = vmatpush1.msra.mxu0 0.0
          %548 = vmatprep.subr.mxu0 0.0
          %549 = vmatpush1.msra.mxu0 0.0
          %550 = vmatprep.subr.mxu0 0.0
          %551 = vmatpush1.msra.mxu0 0.0
          %552 = vmatprep.subr.mxu0 0.0
          %553 = vmatpush1.msra.mxu0 0.0
          %554 = vmatprep.subr.mxu0 0.0
          %555 = vmatpush1.msra.mxu0 0.0
          %556 = vmatprep.subr.mxu0 0.0
          %557 = vmatpush1.msra.mxu0 0.0
          %558 = vmatprep.subr.mxu0 0.0
          %559 = vmatpush1.msra.mxu0 0.0
          %560 = vmatprep.subr.mxu0 0.0
          %561 = vmatpush1.msra.mxu0 0.0
          %562 = vmatprep.subr.mxu0 0.0
          %563 = vmatpush1.msra.mxu0 0.0
          %564 = vmatprep.subr.mxu0 0.0
          %565 = vmatpush1.msra.mxu0 0.0
          %566 = vmatprep.subr.mxu0 0.0
          %567 = vmatpush1.msra.mxu0 0.0
          %568 = vmatprep.mubr.f32.mxu0 0.0
          %569 = vmatmul.mubr.f32.gmra.mrb[0].mxu0 %v502
          %v570 = vpop.f32.mrb[0].mxu0
          %v571 = vadd.f32 0.0, %v570
          %v572 = vpop.f32.mrb[0].mxu0
          %573 = vdwg.mxu0
          %v574 = vadd.f32 %v491, %v571
          %s575 = scalar_lea.vmem [#allocation2], 6
          %v576 = vld [vmem:[%s575] sm:$0x3]
          %s577 = scalar_lea.vmem [#allocation8], 96
          %v578 = vld [vmem:[%s577] sm:$0xff]
          %v579 = vld [vmem:[%s577 + $0x8] sm:$0xff]
          %v580 = vld [vmem:[%s577 + $0x10] sm:$0xff]
          %v581 = vld [vmem:[%s577 + $0x18] sm:$0xff]
          %v583 = vsel %vm305, %v576, 0
          %585 = vmatprep.subr.mxu0 0.0
          %586 = vmatpush1.msra.mxu0 %v578
          %587 = vmatprep.subr.mxu0 0.0
          %588 = vmatpush1.msra.mxu0 %v579
          %589 = vmatprep.subr.mxu0 0.0
          %590 = vmatpush1.msra.mxu0 %v580
          %591 = vmatprep.subr.mxu0 0.0
          %592 = vmatpush1.msra.mxu0 %v581
          %593 = vmatprep.subr.mxu0 0.0
          %594 = vmatpush1.msra.mxu0 0.0
          %595 = vmatprep.subr.mxu0 0.0
          %596 = vmatpush1.msra.mxu0 0.0
          %597 = vmatprep.subr.mxu0 0.0
          %598 = vmatpush1.msra.mxu0 0.0
          %599 = vmatprep.subr.mxu0 0.0
          %600 = vmatpush1.msra.mxu0 0.0
          %601 = vmatprep.subr.mxu0 0.0
          %602 = vmatpush1.msra.mxu0 0.0
          %603 = vmatprep.subr.mxu0 0.0
          %604 = vmatpush1.msra.mxu0 0.0
          %605 = vmatprep.subr.mxu0 0.0
          %606 = vmatpush1.msra.mxu0 0.0
          %607 = vmatprep.subr.mxu0 0.0
          %608 = vmatpush1.msra.mxu0 0.0
          %609 = vmatprep.subr.mxu0 0.0
          %610 = vmatpush1.msra.mxu0 0.0
          %611 = vmatprep.subr.mxu0 0.0
          %612 = vmatpush1.msra.mxu0 0.0
          %613 = vmatprep.subr.mxu0 0.0
          %614 = vmatpush1.msra.mxu0 0.0
          %615 = vmatprep.subr.mxu0 0.0
          %616 = vmatpush1.msra.mxu0 0.0
          %617 = vmatprep.subr.mxu0 0.0
          %618 = vmatpush1.msra.mxu0 0.0
          %619 = vmatprep.subr.mxu0 0.0
          %620 = vmatpush1.msra.mxu0 0.0
          %621 = vmatprep.subr.mxu0 0.0
          %622 = vmatpush1.msra.mxu0 0.0
          %623 = vmatprep.subr.mxu0 0.0
          %624 = vmatpush1.msra.mxu0 0.0
          %625 = vmatprep.subr.mxu0 0.0
          %626 = vmatpush1.msra.mxu0 0.0
          %627 = vmatprep.subr.mxu0 0.0
          %628 = vmatpush1.msra.mxu0 0.0
          %629 = vmatprep.subr.mxu0 0.0
          %630 = vmatpush1.msra.mxu0 0.0
          %631 = vmatprep.subr.mxu0 0.0
          %632 = vmatpush1.msra.mxu0 0.0
          %633 = vmatprep.subr.mxu0 0.0
          %634 = vmatpush1.msra.mxu0 0.0
          %635 = vmatprep.subr.mxu0 0.0
          %636 = vmatpush1.msra.mxu0 0.0
          %637 = vmatprep.subr.mxu0 0.0
          %638 = vmatpush1.msra.mxu0 0.0
          %639 = vmatprep.subr.mxu0 0.0
          %640 = vmatpush1.msra.mxu0 0.0
          %641 = vmatprep.subr.mxu0 0.0
          %642 = vmatpush1.msra.mxu0 0.0
          %643 = vmatprep.subr.mxu0 0.0
          %644 = vmatpush1.msra.mxu0 0.0
          %645 = vmatprep.subr.mxu0 0.0
          %646 = vmatpush1.msra.mxu0 0.0
          %647 = vmatprep.subr.mxu0 0.0
          %648 = vmatpush1.msra.mxu0 0.0
          %649 = vmatprep.mubr.f32.mxu0 0.0
          %650 = vmatmul.mubr.f32.gmra.mrb[0].mxu0 %v583
          %v651 = vpop.f32.mrb[0].mxu0
          %v652 = vadd.f32 0.0, %v651
          %v653 = vpop.f32.mrb[0].mxu0
          %654 = vdwg.mxu0
          %v655 = vadd.f32 %v574, %v652
          %v656 = vld [vmem:[%s3] sm:$0x1]
          %v658 = vlaneseq
          %v659 = vshrl.u32 %v658, 7
          %v660 = vsub.s32 0, %v659
          %v661 = vrot.slane %v656, %v660
          %v663 = vadd.f32 %v655, %v661
          %vm664 = vcmask 287744
          %665 = vst.msk [vmem:[#allocation9] sm:$0x3] %vm664, %v663
        $region56: #{tpu_custom_call.1} parent=35 // pred_fallthru
          _
        // Predicated region
        $region57: #{tpu_custom_call.1} parent=35 // pred_check
          %p666 = pneg %p157
        $region58: #{tpu_custom_call.1} parent=35 // pred_check_branch
          %668 = sbr.rel (%p666) target = $region60
        $region59: #{tpu_custom_call.1} parent=35 // pred_region
          %s670 = ssub.s32 32, 32
          %671 = vsyncadd [#allocation5], %s670
          %s672 = smul.addr %s25, 32
          %s673 = scalar_lea.hbm %s4, %s672
          %s675 = sshll.u32 [#allocation9], 4
          %s676 = int_to_ptr.vmem [resolvable:$true] %s675
          %678 = dma.vmem_to_hbm [thread:$0]  %s676, 32, %s673, [#allocation5]
        $region60: #{tpu_custom_call.1} parent=35 // pred_fallthru
          _
        // Predicated region
        $region61: #{tpu_custom_call.1} parent=35 // pred_check
          %p679 = pneg %p157
        $region62: #{tpu_custom_call.1} parent=35 // pred_check_branch
          %681 = sbr.rel (%p679) target = $region64
        $region63: #{tpu_custom_call.1} parent=35 // pred_region
          %682 = dma.done [#allocation5], 32
        $region64: #{tpu_custom_call.1} parent=35 // pred_fallthru
          _
      $region36: #{tpu_custom_call.1} parent=5 // pred_fallthru
        _
      %p683 = scmp.le.s32.totalorder 2, %s15
      // Predicated region
      $region65: #{tpu_custom_call.1} parent=5 // pred_check
        %p684 = pneg %p683
      $region66: #{tpu_custom_call.1} parent=5 // pred_check_branch
        %686 = sbr.rel (%p684) target = $region68
      $region67: #{tpu_custom_call.1} parent=5 // pred_region
        %s687 = ssub.s32 %s15, 2
      $region68: #{tpu_custom_call.1} parent=5 // pred_fallthru
        _
    $region6: #{tpu_custom_call.1} parent=1 // loop_footer
      %s19 = sadd.s32 1, %s15
    $region7: #{tpu_custom_call.1} parent=1 // loop_footer_branch
      %14 = sbr.rel target = $region3
    $region8: #{tpu_custom_call.1} parent=1 // loop_exit
      _
    %688 = vsyncpa [#allocation4], 1
    %s689 = scalar_lea.sflag [#allocation4], 1
    %690 = vsyncpa %s689, 1
    %691 = vsyncpa [#allocation7], 1
    %s692 = scalar_lea.sflag [#allocation7], 1
    %693 = vsyncpa %s692, 1
    %694 = vsyncpa [#allocation5], 1
    %s695 = scalar_lea.sflag [#allocation5], 1
    %696 = vsyncpa %s695, 1

</llo_original>
